<compile_context>
chip_gen: v6e
topology: v6e:2x2x1
jax: 0.10.0
libtpu: 0.0.40
codegen_flags: <defaults>
</compile_context>

<pallas_src>
import functools

import jax
import jax.numpy as jnp
from jax import lax
from jax.experimental import pallas as pl
from jax.experimental.pallas import tpu as pltpu

LANE = 128   # TPU lane width; all weight / feature columns are padded to this
SUB = 8      # sublane granularity (slab block rows are 8-aligned)
NPAD = 16    # node-count padding granularity (bf16 sublane pack = 16 rows/vreg)
NEG = -1e30  # additive mask value for masked softmax / masked max


def _leaky(x, slope):
    # max(x, slope*x): 2 VPU ops instead of cmp+select+mul.
    return jnp.maximum(x, slope * x)


def _round_up(n, m):
    return (n + m - 1) // m * m


# --------------------------------------------------------------------------- #
# Kernel
# --------------------------------------------------------------------------- #
def _fused_kernel(x_ref, adjb_ref, bone_ref, maxbias_ref, slab_ref, out_ref):
    cin8 = x_ref.shape[1]          # static
    n_graphs = bone_ref.shape[0]   # static

    # ---- lazy parameter-slab views (static 8-aligned offsets; each weight
    #      block is loaded only at its point of use) -------------------------
    off = [0]

    def take(nrows):
        view = slab_ref.at[pl.ds(off[0], nrows), :]
        off[0] += nrows
        return view

    w1_r = take(cin8)        # [cin8, 128]   GAT1 linear
    att1_r = take(SUB)       # rows: 0=a_src, 1=a_dst, 2=bias
    w2_r = take(LANE)        # [128, 128]    GAT2 linear
    att2_r = take(SUB)
    hw1m_r = take(LANE)      # fused head layer-1 weights (mean branch)
    hw1x_r = take(LANE)      # fused head layer-1 weights (max branch)
    hb1_r = take(SUB)        # row 0 = fused bias
    hw2_r = take(LANE)       # block-diag (chi0 | rp) second dense
    hb2_r = take(SUB)
    hw3_r = take(LANE)       # final dense, col 0 = chi0, col 1 = rp
    hb3_r = take(SUB)

    x = x_ref[...]                                   # [Np, cin8] f32
    # Additive attention mask (0 on edges, -1e30 elsewhere); cast once, reused
    # by both GAT layers.  Masking / exp stay in f32 (bf16 only on MXU inputs).
    adj_bias = adjb_ref[...].astype(jnp.float32)     # [Np, Np]
    bone = bone_ref[...]                             # [G, Np] one-hot (f32)
    maxbias = maxbias_ref[...]                       # [Np, G] 0 / -1e30

    def gat(h_in, w_r, att_r):
        att = att_r[...]                             # [8, 128] — one vreg pair
        a_src, a_dst, bias = att[0:1, :], att[1:2, :], att[2:3, :]
        # bf16 MXU operands, f32 accumulation (standard flash-attn tradeoff).
        h = jnp.dot(h_in.astype(jnp.bfloat16), w_r[...].astype(jnp.bfloat16),
                    preferred_element_type=jnp.float32)                # [Np,128]
        # attention logits on the MXU (no cross-lane reduce / transpose relayout)
        ad_col = lax.dot_general(h, a_dst, (((1,), (1,)), ((), ())),
                                 preferred_element_type=jnp.float32)   # [Np, 1]
        as_row = lax.dot_general(a_src, h, (((1,), (1,)), ((), ())),
                                 preferred_element_type=jnp.float32)   # [1, Np]
        score = _leaky(ad_col + as_row, 0.2) + adj_bias                # [Np, Np]
        score = score - jnp.max(score, axis=1, keepdims=True)
        e = jnp.exp(score)            # masked entries underflow to exactly 0 (f32)
        rowsum = jnp.sum(e, axis=1, keepdims=True)                     # [Np, 1]
        # un-normalized aggregation; single [Np,128] rescale via EUP reciprocal
        agg = jnp.dot(e.astype(jnp.bfloat16), h.astype(jnp.bfloat16),
                      preferred_element_type=jnp.float32)              # [Np,128]
        return agg * pl.reciprocal(rowsum, approx=True) + bias

    # Two GAT layers + LeakyReLU(0.01) (nn.LeakyReLU default)
    h1 = _leaky(gat(x, w1_r, att1_r), 0.01)
    h2 = _leaky(gat(h1, w2_r, att2_r), 0.01)
    # NOTE: rows of h1/h2 beyond the real node count are garbage (fully-masked
    # softmax rows).  The pooling masks below exclude them from every output;
    # do not consume h2 rows >= N elsewhere.

    # ---- global mean / max pooling -----------------------------------------
    counts = jnp.maximum(jnp.sum(bone, axis=1, keepdims=True), 1.0)    # [G, 1]
    meanp = jnp.dot(bone, h2, preferred_element_type=jnp.float32) / counts

    rows = []
    for g in range(n_graphs):          # G is tiny & static: no [G,N,H] broadcast
        rows.append(jnp.max(h2 + maxbias[:, g:g + 1], axis=0, keepdims=True))
    maxp = jnp.concatenate(rows, axis=0)                               # [G, 128]

    # ---- fused chi0 / rp heads: 3 matmuls, one store (kept f32, tiny) -------
    z = _leaky(jnp.dot(meanp, hw1m_r[...], preferred_element_type=jnp.float32)
               + jnp.dot(maxp, hw1x_r[...], preferred_element_type=jnp.float32)
               + hb1_r[...][0:1, :], 0.01)
    z = _leaky(jnp.dot(z, hw2_r[...], preferred_element_type=jnp.float32)
               + hb2_r[...][0:1, :], 0.01)
    out_ref[...] = (jnp.dot(z, hw3_r[...], preferred_element_type=jnp.float32)
                    + hb3_r[...][0:1, :])


# --------------------------------------------------------------------------- #
# Wrapper-side parameter packing (one lane-dense slab)
# --------------------------------------------------------------------------- #
def _pad2d(a, rows, cols):
    return jnp.zeros((rows, cols), jnp.float32).at[:a.shape[0], :a.shape[1]].set(
        a.astype(jnp.float32))


def _pack_param_slab(params, in_channels):
    H = params["w1"].shape[1]     # gcn_nodes * heads
    D = params["cw1"].shape[1]    # dense nodes
    cin8 = _round_up(in_channels, SUB)

    # Packing-layout preconditions (would otherwise produce silent wrong answers).
    assert H <= LANE, f"gcn_nodes*heads={H} must be <= {LANE}"
    assert 2 * D <= LANE, f"2*dense_nodes={2 * D} must be <= {LANE}"
    assert params["cw1"].shape[0] == 2 * H and params["rw1"].shape[0] == 2 * H

    def att_block(a_src, a_dst, b):
        return _pad2d(jnp.concatenate([a_src, a_dst, b], axis=0), SUB, LANE)

    def head1(branch):  # branch 0 -> mean rows of cw1/rw1, 1 -> max rows
        w = jnp.zeros((LANE, LANE), jnp.float32)
        w = w.at[:H, 0:D].set(params["cw1"][branch * H:(branch + 1) * H, :])
        w = w.at[:H, D:2 * D].set(params["rw1"][branch * H:(branch + 1) * H, :])
        return w

    hb1 = _pad2d(jnp.concatenate([params["cb1"], params["rb1"]], axis=1), SUB, LANE)
    hw2 = jnp.zeros((LANE, LANE), jnp.float32)
    hw2 = hw2.at[0:D, 0:D].set(params["cw2"]).at[D:2 * D, D:2 * D].set(params["rw2"])
    hb2 = _pad2d(jnp.concatenate([params["cb2"], params["rb2"]], axis=1), SUB, LANE)
    hw3 = jnp.zeros((LANE, LANE), jnp.float32)
    hw3 = hw3.at[0:D, 0:1].set(params["cw3"]).at[D:2 * D, 1:2].set(params["rw3"])
    hb3 = jnp.zeros((SUB, LANE), jnp.float32)
    hb3 = hb3.at[0, 0].set(params["cb3"][0, 0]).at[0, 1].set(params["rb3"][0, 0])

    blocks = [
        _pad2d(params["w1"], cin8, LANE),
        att_block(params["as1"], params["ad1"], params["b1"]),
        _pad2d(params["w2"], LANE, LANE),
        att_block(params["as2"], params["ad2"], params["b2"]),
        head1(0), head1(1), hb1, hw2, hb2, hw3, hb3,
    ]
    return jnp.concatenate(blocks, axis=0)   # [cin8 + 680, 128]


def init_params(key, in_channels=4, gcn_nodes=16, dense_nodes=32, heads=1):
    """Deterministic synthetic weights (glorot-uniform, zero biases)."""
    H = gcn_nodes * heads
    ks = iter(jax.random.split(key, 16))

    def glorot(shape):
        fan_in, fan_out = shape[0], shape[-1]
        lim = (6.0 / (fan_in + fan_out)) ** 0.5
        return jax.random.uniform(next(ks), shape, jnp.float32, -lim, lim)

    z = lambda *s: jnp.zeros(s, jnp.float32)
    return {
        "w1": glorot((in_channels, H)), "as1": glorot((1, H)),
        "ad1": glorot((1, H)), "b1": z(1, H),
        "w2": glorot((H, H)), "as2": glorot((1, H)),
        "ad2": glorot((1, H)), "b2": z(1, H),
        "cw1": glorot((2 * H, dense_nodes)), "cb1": z(1, dense_nodes),
        "cw2": glorot((dense_nodes, dense_nodes)), "cb2": z(1, dense_nodes),
        "cw3": glorot((dense_nodes, 1)), "cb3": z(1, 1),
        "rw1": glorot((2 * H, dense_nodes)), "rb1": z(1, dense_nodes),
        "rw2": glorot((dense_nodes, dense_nodes)), "rb2": z(1, dense_nodes),
        "rw3": glorot((dense_nodes, 1)), "rb3": z(1, 1),
    }


def _vmem_limit_bytes():
    # Derive from hardware capacity with headroom (v7x: 64 MiB physical).
    try:
        cap = int(pltpu.get_tpu_info().vmem_capacity_bytes)
    except Exception:
        cap = 64 * 1024 * 1024
    return int(max(32 * 1024 * 1024, min(cap - 16 * 1024 * 1024, 112 * 1024 * 1024)))


# --------------------------------------------------------------------------- #
# Forward
# --------------------------------------------------------------------------- #
@functools.partial(jax.jit, static_argnames=("num_graphs",))
def model_1_2_forward(X, Edge_index, Edge_weight, Batching, params, *, num_graphs):
    del Edge_weight  # ignored by GATConv(edge_dim=None), see note at top
    N, Cin = X.shape
    # Sublane padding only (16-aligned).  Lane-direction padding happens inside
    # the vreg anyway, so padding N to 128 would just multiply real N^2 work.
    n_pad = _round_up(max(N, 1), NPAD)
    cin8 = _round_up(Cin, SUB)

    # Node features padded to [n_pad, cin8]
    xp = jnp.zeros((n_pad, cin8), jnp.float32).at[:N, :Cin].set(X.astype(jnp.float32))

    # add_self_loops + dense ADDITIVE attention mask: 0 on edges, -1e30 elsewhere.
    # TODO(synk): for N >~ 2k nodes, stop densifying the adjacency wrapper-side;
    # stream CSR row-blocks via PrefetchScalarGridSpec + flash-style online
    # softmax over a "parallel" destination-row grid axis (2-TC split on v7x).
    loop = jnp.arange(N, dtype=Edge_index.dtype)
    ei = jnp.concatenate([Edge_index, jnp.stack([loop, loop])], axis=1)
    src, dst = ei[0], ei[1]
    adj_bias = jnp.full((n_pad, n_pad), NEG, jnp.bfloat16).at[dst, src].set(0.0)

    # One-hot graph membership (mean pool) and additive max-pool mask.
    gids = jnp.arange(num_graphs, dtype=Batching.dtype)
    bone = jnp.zeros((num_graphs, n_pad), jnp.float32).at[:, :N].set(
        (gids[:, None] == Batching[None, :]).astype(jnp.float32))
    maxbias = jnp.where(bone.T > 0, 0.0, NEG).astype(jnp.float32)      # [n_pad, G]

    slab = _pack_param_slab(params, Cin)                               # one param DMA

    # Advisory cost estimate so XLA overlaps mask construction with the kernel.
    flops = (2 * n_pad * (cin8 + LANE) * LANE            # feature transforms
             + 2 * 2 * n_pad * n_pad * (LANE + 2)        # logits + aggregation (2 layers)
             + 2 * num_graphs * n_pad * LANE             # mean pool
             + 2 * num_graphs * LANE * LANE * 4)         # fused heads
    transcendentals = 2 * n_pad * n_pad + 4 * n_pad
    bytes_accessed = sum(int(a.size) * a.dtype.itemsize
                         for a in (xp, adj_bias, bone, maxbias, slab)) \
        + num_graphs * LANE * 4

    out = pl.pallas_call(
        _fused_kernel,
        out_shape=jax.ShapeDtypeStruct((num_graphs, LANE), jnp.float32),
        in_specs=[pl.BlockSpec(memory_space=pltpu.MemorySpace.VMEM)] * 5,
        out_specs=pl.BlockSpec(memory_space=pltpu.MemorySpace.VMEM),
        compiler_params=pltpu.CompilerParams(vmem_limit_bytes=_vmem_limit_bytes()),
        cost_estimate=pl.CostEstimate(flops=int(flops),
                                      transcendentals=int(transcendentals),
                                      bytes_accessed=int(bytes_accessed)),
    )(xp, adj_bias, bone, maxbias, slab)
    return out[:, :2]                                                  # [G, 2]


if __name__ == "__main__":
    key = jax.random.PRNGKey(0)
    k_x, k_p = jax.random.split(key)

    num_graphs = 2
    nodes_per_graph = 8
    N = num_graphs * nodes_per_graph
    in_channels = 4

    # Node features
    X = jax.random.normal(k_x, (N, in_channels), jnp.float32)

    # Bidirectional chain within each graph (no duplicate edges, no self loops yet)
    edges = []
    for g in range(num_graphs):
        base = g * nodes_per_graph
        for i in range(nodes_per_graph - 1):
            edges.append((base + i, base + i + 1))
            edges.append((base + i + 1, base + i))
    Edge_index = jnp.array(edges, dtype=jnp.int32).T           # [2, E]
    Edge_weight = jnp.ones((Edge_index.shape[1],), jnp.float32)
    Batching = jnp.repeat(jnp.arange(num_graphs, dtype=jnp.int32), nodes_per_graph)

    params = init_params(k_p, in_channels=in_channels, gcn_nodes=16,
                         dense_nodes=32, heads=1)

    out = model_1_2_forward(X, Edge_index, Edge_weight, Batching, params,
                            num_graphs=num_graphs)
    out = jax.block_until_ready(out)
    assert out.shape == (num_graphs, 2) and out.dtype == jnp.float32
    assert bool(jnp.all(jnp.isfinite(out)))
    print("KERNEL_OK")
</pallas_src>

<mosaic_0001>
module attributes {stable_mosaic.version = 11 : i64} {
  func.func @_fused_kernel(%arg0: memref<16x8xf32, #tpu.memory_space<vmem>>, %arg1: memref<16x16xbf16, #tpu.memory_space<vmem>>, %arg2: memref<2x16xf32, #tpu.memory_space<vmem>>, %arg3: memref<16x2xf32, #tpu.memory_space<vmem>>, %arg4: memref<688x128xf32, #tpu.memory_space<vmem>>, %arg5: memref<2x128xf32, #tpu.memory_space<vmem>>) attributes {dimension_semantics = [], scalar_prefetch = 0 : i64, scratch_operands = 0 : i64, tpu.core_type = #tpu.core_type<tc>} {
    %c0 = arith.constant 0 : index
    %c0_0 = arith.constant 0 : index
    %0 = vector.load %arg0[%c0, %c0_0] : memref<16x8xf32, #tpu.memory_space<vmem>>, vector<16x8xf32>
    %c0_1 = arith.constant 0 : index
    %c0_2 = arith.constant 0 : index
    %1 = vector.load %arg1[%c0_1, %c0_2] : memref<16x16xbf16, #tpu.memory_space<vmem>>, vector<16x16xbf16>
    %2 = arith.extf %1 : vector<16x16xbf16> to vector<16x16xf32>
    %c0_3 = arith.constant 0 : index
    %c0_4 = arith.constant 0 : index
    %3 = vector.load %arg2[%c0_3, %c0_4] : memref<2x16xf32, #tpu.memory_space<vmem>>, vector<2x16xf32>
    %c0_5 = arith.constant 0 : index
    %c0_6 = arith.constant 0 : index
    %4 = vector.load %arg3[%c0_5, %c0_6] : memref<16x2xf32, #tpu.memory_space<vmem>>, vector<16x2xf32>
    %c8 = arith.constant 8 : index
    %c0_7 = arith.constant 0 : index
    %5 = vector.load %arg4[%c8, %c0_7] : memref<688x128xf32, #tpu.memory_space<vmem>>, vector<8x128xf32>
    %6 = vector.extract_strided_slice %5 {offsets = [0, 0], sizes = [1, 128], strides = [1, 1]} : vector<8x128xf32> to vector<1x128xf32>
    %7 = vector.extract_strided_slice %5 {offsets = [1, 0], sizes = [1, 128], strides = [1, 1]} : vector<8x128xf32> to vector<1x128xf32>
    %8 = vector.extract_strided_slice %5 {offsets = [2, 0], sizes = [1, 128], strides = [1, 1]} : vector<8x128xf32> to vector<1x128xf32>
    %9 = arith.truncf %0 : vector<16x8xf32> to vector<16x8xbf16>
    %c0_8 = arith.constant 0 : index
    %c0_9 = arith.constant 0 : index
    %10 = vector.load %arg4[%c0_8, %c0_9] : memref<688x128xf32, #tpu.memory_space<vmem>>, vector<8x128xf32>
    %11 = arith.truncf %10 : vector<8x128xf32> to vector<8x128xbf16>
    %cst = arith.constant dense<0.000000e+00> : vector<16x128xf32>
    %12 = tpu.matmul %9, %11, %cst {dimension_numbers = #tpu.dot_dimension_numbers<[1], [0], [0], [1], [0, 0, 1, 1], [], []>} : vector<16x8xbf16>, vector<8x128xbf16>, vector<16x128xf32> -> vector<16x128xf32>
    %cst_10 = arith.constant dense<0.000000e+00> : vector<16x1xf32>
    %13 = tpu.matmul %12, %7, %cst_10 {dimension_numbers = #tpu.dot_dimension_numbers<[1], [1], [0], [0], [0, 0, 1, 0], [], []>} : vector<16x128xf32>, vector<1x128xf32>, vector<16x1xf32> -> vector<16x1xf32>
    %cst_11 = arith.constant dense<0.000000e+00> : vector<1x16xf32>
    %14 = tpu.matmul %6, %12, %cst_11 {dimension_numbers = #tpu.dot_dimension_numbers<[1], [1], [0], [0], [0, 0, 1, 0], [], []>} : vector<1x128xf32>, vector<16x128xf32>, vector<1x16xf32> -> vector<1x16xf32>
    %15 = vector.broadcast %13 : vector<16x1xf32> to vector<16x16xf32>
    %16 = vector.broadcast %14 : vector<1x16xf32> to vector<16x16xf32>
    %17 = arith.addf %15, %16 : vector<16x16xf32>
    %cst_12 = arith.constant 2.000000e-01 : f32
    %18 = vector.broadcast %cst_12 : f32 to vector<16x16xf32>
    %19 = arith.mulf %18, %17 : vector<16x16xf32>
    %20 = arith.maximumf %17, %19 : vector<16x16xf32>
    %21 = arith.addf %20, %2 : vector<16x16xf32>
    %cst_13 = arith.constant dense<0xFF800000> : vector<16xf32>
    %22 = vector.multi_reduction <maximumf>, %21, %cst_13 [1] : vector<16x16xf32> to vector<16xf32>
    %23 = vector.shape_cast %22 : vector<16xf32> to vector<16x1xf32>
    %24 = vector.broadcast %23 : vector<16x1xf32> to vector<16x16xf32>
    %25 = arith.subf %21, %24 : vector<16x16xf32>
    %26 = math.exp %25 : vector<16x16xf32>
    %cst_14 = arith.constant dense<0.000000e+00> : vector<16xf32>
    %27 = vector.multi_reduction <add>, %26, %cst_14 [1] : vector<16x16xf32> to vector<16xf32>
    %28 = vector.shape_cast %27 : vector<16xf32> to vector<16x1xf32>
    %29 = arith.truncf %26 : vector<16x16xf32> to vector<16x16xbf16>
    %30 = arith.truncf %12 : vector<16x128xf32> to vector<16x128xbf16>
    %cst_15 = arith.constant dense<0.000000e+00> : vector<16x128xf32>
    %31 = tpu.matmul %29, %30, %cst_15 {dimension_numbers = #tpu.dot_dimension_numbers<[1], [0], [0], [1], [0, 0, 1, 1], [], []>} : vector<16x16xbf16>, vector<16x128xbf16>, vector<16x128xf32> -> vector<16x128xf32>
    %32 = tpu.reciprocal %28 {approx = true} : vector<16x1xf32> -> vector<16x1xf32>
    %33 = vector.broadcast %32 : vector<16x1xf32> to vector<16x128xf32>
    %34 = arith.mulf %31, %33 : vector<16x128xf32>
    %35 = vector.broadcast %8 : vector<1x128xf32> to vector<16x128xf32>
    %36 = arith.addf %34, %35 : vector<16x128xf32>
    %cst_16 = arith.constant 0.00999999977 : f32
    %37 = vector.broadcast %cst_16 : f32 to vector<16x128xf32>
    %38 = arith.mulf %37, %36 : vector<16x128xf32>
    %39 = arith.maximumf %36, %38 : vector<16x128xf32>
    %c144 = arith.constant 144 : index
    %c0_17 = arith.constant 0 : index
    %40 = vector.load %arg4[%c144, %c0_17] : memref<688x128xf32, #tpu.memory_space<vmem>>, vector<8x128xf32>
    %41 = vector.extract_strided_slice %40 {offsets = [0, 0], sizes = [1, 128], strides = [1, 1]} : vector<8x128xf32> to vector<1x128xf32>
    %42 = vector.extract_strided_slice %40 {offsets = [1, 0], sizes = [1, 128], strides = [1, 1]} : vector<8x128xf32> to vector<1x128xf32>
    %43 = vector.extract_strided_slice %40 {offsets = [2, 0], sizes = [1, 128], strides = [1, 1]} : vector<8x128xf32> to vector<1x128xf32>
    %44 = arith.truncf %39 : vector<16x128xf32> to vector<16x128xbf16>
    %c16 = arith.constant 16 : index
    %c0_18 = arith.constant 0 : index
    %45 = vector.load %arg4[%c16, %c0_18] : memref<688x128xf32, #tpu.memory_space<vmem>>, vector<128x128xf32>
    %46 = arith.truncf %45 : vector<128x128xf32> to vector<128x128xbf16>
    %cst_19 = arith.constant dense<0.000000e+00> : vector<16x128xf32>
    %47 = tpu.matmul %44, %46, %cst_19 {dimension_numbers = #tpu.dot_dimension_numbers<[1], [0], [0], [1], [0, 0, 1, 1], [], []>} : vector<16x128xbf16>, vector<128x128xbf16>, vector<16x128xf32> -> vector<16x128xf32>
    %cst_20 = arith.constant dense<0.000000e+00> : vector<16x1xf32>
    %48 = tpu.matmul %47, %42, %cst_20 {dimension_numbers = #tpu.dot_dimension_numbers<[1], [1], [0], [0], [0, 0, 1, 0], [], []>} : vector<16x128xf32>, vector<1x128xf32>, vector<16x1xf32> -> vector<16x1xf32>
    %cst_21 = arith.constant dense<0.000000e+00> : vector<1x16xf32>
    %49 = tpu.matmul %41, %47, %cst_21 {dimension_numbers = #tpu.dot_dimension_numbers<[1], [1], [0], [0], [0, 0, 1, 0], [], []>} : vector<1x128xf32>, vector<16x128xf32>, vector<1x16xf32> -> vector<1x16xf32>
    %50 = vector.broadcast %48 : vector<16x1xf32> to vector<16x16xf32>
    %51 = vector.broadcast %49 : vector<1x16xf32> to vector<16x16xf32>
    %52 = arith.addf %50, %51 : vector<16x16xf32>
    %cst_22 = arith.constant 2.000000e-01 : f32
    %53 = vector.broadcast %cst_22 : f32 to vector<16x16xf32>
    %54 = arith.mulf %53, %52 : vector<16x16xf32>
    %55 = arith.maximumf %52, %54 : vector<16x16xf32>
    %56 = arith.addf %55, %2 : vector<16x16xf32>
    %cst_23 = arith.constant dense<0xFF800000> : vector<16xf32>
    %57 = vector.multi_reduction <maximumf>, %56, %cst_23 [1] : vector<16x16xf32> to vector<16xf32>
    %58 = vector.shape_cast %57 : vector<16xf32> to vector<16x1xf32>
    %59 = vector.broadcast %58 : vector<16x1xf32> to vector<16x16xf32>
    %60 = arith.subf %56, %59 : vector<16x16xf32>
    %61 = math.exp %60 : vector<16x16xf32>
    %cst_24 = arith.constant dense<0.000000e+00> : vector<16xf32>
    %62 = vector.multi_reduction <add>, %61, %cst_24 [1] : vector<16x16xf32> to vector<16xf32>
    %63 = vector.shape_cast %62 : vector<16xf32> to vector<16x1xf32>
    %64 = arith.truncf %61 : vector<16x16xf32> to vector<16x16xbf16>
    %65 = arith.truncf %47 : vector<16x128xf32> to vector<16x128xbf16>
    %cst_25 = arith.constant dense<0.000000e+00> : vector<16x128xf32>
    %66 = tpu.matmul %64, %65, %cst_25 {dimension_numbers = #tpu.dot_dimension_numbers<[1], [0], [0], [1], [0, 0, 1, 1], [], []>} : vector<16x16xbf16>, vector<16x128xbf16>, vector<16x128xf32> -> vector<16x128xf32>
    %67 = tpu.reciprocal %63 {approx = true} : vector<16x1xf32> -> vector<16x1xf32>
    %68 = vector.broadcast %67 : vector<16x1xf32> to vector<16x128xf32>
    %69 = arith.mulf %66, %68 : vector<16x128xf32>
    %70 = vector.broadcast %43 : vector<1x128xf32> to vector<16x128xf32>
    %71 = arith.addf %69, %70 : vector<16x128xf32>
    %cst_26 = arith.constant 0.00999999977 : f32
    %72 = vector.broadcast %cst_26 : f32 to vector<16x128xf32>
    %73 = arith.mulf %72, %71 : vector<16x128xf32>
    %74 = arith.maximumf %71, %73 : vector<16x128xf32>
    %cst_27 = arith.constant dense<0.000000e+00> : vector<2xf32>
    %75 = vector.multi_reduction <add>, %3, %cst_27 [1] : vector<2x16xf32> to vector<2xf32>
    %76 = vector.shape_cast %75 : vector<2xf32> to vector<2x1xf32>
    %cst_28 = arith.constant 1.000000e+00 : f32
    %77 = vector.broadcast %cst_28 : f32 to vector<2x1xf32>
    %78 = arith.maximumf %76, %77 : vector<2x1xf32>
    %cst_29 = arith.constant dense<0.000000e+00> : vector<2x128xf32>
    %79 = tpu.matmul %3, %74, %cst_29 {dimension_numbers = #tpu.dot_dimension_numbers<[1], [0], [0], [1], [0, 0, 1, 1], [], []>} : vector<2x16xf32>, vector<16x128xf32>, vector<2x128xf32> -> vector<2x128xf32>
    %80 = vector.broadcast %78 : vector<2x1xf32> to vector<2x128xf32>
    %81 = arith.divf %79, %80 : vector<2x128xf32>
    %82 = vector.extract_strided_slice %4 {offsets = [0, 0], sizes = [16, 1], strides = [1, 1]} : vector<16x2xf32> to vector<16x1xf32>
    %83 = vector.broadcast %82 : vector<16x1xf32> to vector<16x128xf32>
    %84 = arith.addf %74, %83 : vector<16x128xf32>
    %cst_30 = arith.constant dense<0xFF800000> : vector<128xf32>
    %85 = vector.multi_reduction <maximumf>, %84, %cst_30 [0] : vector<16x128xf32> to vector<128xf32>
    %86 = vector.shape_cast %85 : vector<128xf32> to vector<1x128xf32>
    %87 = vector.extract_strided_slice %4 {offsets = [0, 1], sizes = [16, 1], strides = [1, 1]} : vector<16x2xf32> to vector<16x1xf32>
    %88 = vector.broadcast %87 : vector<16x1xf32> to vector<16x128xf32>
    %89 = arith.addf %74, %88 : vector<16x128xf32>
    %cst_31 = arith.constant dense<0xFF800000> : vector<128xf32>
    %90 = vector.multi_reduction <maximumf>, %89, %cst_31 [0] : vector<16x128xf32> to vector<128xf32>
    %91 = vector.shape_cast %90 : vector<128xf32> to vector<1x128xf32>
    %92 = tpu.concatenate %86, %91 in 0 : vector<1x128xf32>, vector<1x128xf32> -> vector<2x128xf32>
    %c152 = arith.constant 152 : index
    %c0_32 = arith.constant 0 : index
    %93 = vector.load %arg4[%c152, %c0_32] : memref<688x128xf32, #tpu.memory_space<vmem>>, vector<128x128xf32>
    %cst_33 = arith.constant dense<0.000000e+00> : vector<2x128xf32>
    %94 = tpu.matmul %81, %93, %cst_33 {dimension_numbers = #tpu.dot_dimension_numbers<[1], [0], [0], [1], [0, 0, 1, 1], [], []>} : vector<2x128xf32>, vector<128x128xf32>, vector<2x128xf32> -> vector<2x128xf32>
    %c280 = arith.constant 280 : index
    %c0_34 = arith.constant 0 : index
    %95 = vector.load %arg4[%c280, %c0_34] : memref<688x128xf32, #tpu.memory_space<vmem>>, vector<128x128xf32>
    %cst_35 = arith.constant dense<0.000000e+00> : vector<2x128xf32>
    %96 = tpu.matmul %92, %95, %cst_35 {dimension_numbers = #tpu.dot_dimension_numbers<[1], [0], [0], [1], [0, 0, 1, 1], [], []>} : vector<2x128xf32>, vector<128x128xf32>, vector<2x128xf32> -> vector<2x128xf32>
    %97 = arith.addf %94, %96 : vector<2x128xf32>
    %c408 = arith.constant 408 : index
    %c0_36 = arith.constant 0 : index
    %98 = vector.load %arg4[%c408, %c0_36] : memref<688x128xf32, #tpu.memory_space<vmem>>, vector<8x128xf32>
    %99 = vector.extract_strided_slice %98 {offsets = [0, 0], sizes = [1, 128], strides = [1, 1]} : vector<8x128xf32> to vector<1x128xf32>
    %100 = vector.broadcast %99 : vector<1x128xf32> to vector<2x128xf32>
    %101 = arith.addf %97, %100 : vector<2x128xf32>
    %cst_37 = arith.constant 0.00999999977 : f32
    %102 = vector.broadcast %cst_37 : f32 to vector<2x128xf32>
    %103 = arith.mulf %102, %101 : vector<2x128xf32>
    %104 = arith.maximumf %101, %103 : vector<2x128xf32>
    %c416 = arith.constant 416 : index
    %c0_38 = arith.constant 0 : index
    %105 = vector.load %arg4[%c416, %c0_38] : memref<688x128xf32, #tpu.memory_space<vmem>>, vector<128x128xf32>
    %cst_39 = arith.constant dense<0.000000e+00> : vector<2x128xf32>
    %106 = tpu.matmul %104, %105, %cst_39 {dimension_numbers = #tpu.dot_dimension_numbers<[1], [0], [0], [1], [0, 0, 1, 1], [], []>} : vector<2x128xf32>, vector<128x128xf32>, vector<2x128xf32> -> vector<2x128xf32>
    %c544 = arith.constant 544 : index
    %c0_40 = arith.constant 0 : index
    %107 = vector.load %arg4[%c544, %c0_40] : memref<688x128xf32, #tpu.memory_space<vmem>>, vector<8x128xf32>
    %108 = vector.extract_strided_slice %107 {offsets = [0, 0], sizes = [1, 128], strides = [1, 1]} : vector<8x128xf32> to vector<1x128xf32>
    %109 = vector.broadcast %108 : vector<1x128xf32> to vector<2x128xf32>
    %110 = arith.addf %106, %109 : vector<2x128xf32>
    %cst_41 = arith.constant 0.00999999977 : f32
    %111 = vector.broadcast %cst_41 : f32 to vector<2x128xf32>
    %112 = arith.mulf %111, %110 : vector<2x128xf32>
    %113 = arith.maximumf %110, %112 : vector<2x128xf32>
    %c552 = arith.constant 552 : index
    %c0_42 = arith.constant 0 : index
    %114 = vector.load %arg4[%c552, %c0_42] : memref<688x128xf32, #tpu.memory_space<vmem>>, vector<128x128xf32>
    %cst_43 = arith.constant dense<0.000000e+00> : vector<2x128xf32>
    %115 = tpu.matmul %113, %114, %cst_43 {dimension_numbers = #tpu.dot_dimension_numbers<[1], [0], [0], [1], [0, 0, 1, 1], [], []>} : vector<2x128xf32>, vector<128x128xf32>, vector<2x128xf32> -> vector<2x128xf32>
    %c680 = arith.constant 680 : index
    %c0_44 = arith.constant 0 : index
    %116 = vector.load %arg4[%c680, %c0_44] : memref<688x128xf32, #tpu.memory_space<vmem>>, vector<8x128xf32>
    %117 = vector.extract_strided_slice %116 {offsets = [0, 0], sizes = [1, 128], strides = [1, 1]} : vector<8x128xf32> to vector<1x128xf32>
    %118 = vector.broadcast %117 : vector<1x128xf32> to vector<2x128xf32>
    %119 = arith.addf %115, %118 : vector<2x128xf32>
    %c0_45 = arith.constant 0 : index
    %c0_46 = arith.constant 0 : index
    %120 = vector.load %arg5[%c0_45, %c0_46] : memref<2x128xf32, #tpu.memory_space<vmem>>, vector<2x128xf32>
    tpu.vector_store %arg5[%c0_45, %c0_46], %119 {strides = array<i32>} : memref<2x128xf32, #tpu.memory_space<vmem>>, vector<2x128xf32>,
    return
  }
}

</mosaic_0001>

<llo_original>
// kernel: model_1_2_forward.1
$region0: #{model_1_2_forward.1}
  #allocation0 [shape = 'u32[]', space=smem, size = 0x4, offset = 0x4, fixed_abs, tag = 'smem constant byte address 0x4 - core index']
  #allocation1 [shape = 'u32[144,128]{1,0:T(1,128)}', space=vmem, size = 0x12000, scoped, tag = 'internal scratch']
  %s0 = inlined_call_operand.vmem [shape: f32[16,8], index: 0, kind: input, shape index: {}]
  %s1 = inlined_call_operand.vmem [shape: bf16[16,16], index: 1, kind: input, shape index: {}]
  %s2 = inlined_call_operand.vmem [shape: f32[2,16], index: 2, kind: input, shape index: {}]
  %s3 = inlined_call_operand.vmem [shape: f32[16,2], index: 3, kind: input, shape index: {}]
  %s4 = inlined_call_operand.vmem [shape: f32[688,128], index: 4, kind: input, shape index: {}]
  %s5 = inlined_call_operand.hbm [shape: f32[2,128], index: 5, kind: output, shape index: {}]
  %s6 = sld [smem:[#allocation0]]
  $region30: #{model_1_2_forward.1} parent=0
    _
  %s8 = ssub.s32 1, %s6
  %s9 = scalar_select 0, %s8, %s6
  $region1: #{model_1_2_forward.1} parent=0
    #allocation2 [shape = 'u8[1024]{0}', space=vmem, size = 0x400, scoped, tag = 'output window, operand 0, single buffered']
    #allocation3 [shape = 's32[1]{0}', space=sflag, size = 0x4, scoped, tag = 'scoped memory for model_1_2_forward.1']
    %10 = vsyncpa [#allocation3], 0
    // Predicated region
    $region2: #{model_1_2_forward.1} parent=1 // pred_check
      _
    $region3: #{model_1_2_forward.1} parent=1 // pred_check_branch
      %12 = sbr.rel (0) target = $region5
    $region4: #{model_1_2_forward.1} parent=1 // pred_region
      _
    $region5: #{model_1_2_forward.1} parent=1 // pred_fallthru
      _
    // Predicated region
    $region6: #{model_1_2_forward.1} parent=1 // pred_check
      _
    $region7: #{model_1_2_forward.1} parent=1 // pred_check_branch
      %14 = sbr.rel (0) target = $region9
    $region8: #{model_1_2_forward.1} parent=1 // pred_region
      _
    $region9: #{model_1_2_forward.1} parent=1 // pred_fallthru
      _
    // Predicated region
    $region10: #{model_1_2_forward.1} parent=1 // pred_check
      _
    $region11: #{model_1_2_forward.1} parent=1 // pred_check_branch
      %16 = sbr.rel (0) target = $region13
    $region12: #{model_1_2_forward.1} parent=1 // pred_region
      _
    $region13: #{model_1_2_forward.1} parent=1 // pred_fallthru
      _
    // Predicated region
    $region14: #{model_1_2_forward.1} parent=1 // pred_check
      _
    $region15: #{model_1_2_forward.1} parent=1 // pred_check_branch
      %18 = sbr.rel (0) target = $region17
    $region16: #{model_1_2_forward.1} parent=1 // pred_region
      _
    $region17: #{model_1_2_forward.1} parent=1 // pred_fallthru
      _
    // Predicated region
    $region18: #{model_1_2_forward.1} parent=1 // pred_check
      _
    $region19: #{model_1_2_forward.1} parent=1 // pred_check_branch
      %20 = sbr.rel (0) target = $region21
    $region20: #{model_1_2_forward.1} parent=1 // pred_region
      _
    $region21: #{model_1_2_forward.1} parent=1 // pred_fallthru
      _
    %v22 = vld [vmem:[%s0] sm:$0xff]
    %v23 = vld [vmem:[%s0 + $0x8] sm:$0xff]
    %v24 = vld [vmem:[%s1] sm:$0xf]
    %v25 = vld [vmem:[%s1 + $0x4] sm:$0xf]
    %v26 = vunpack.c.l.bf16 %v24
    %v27 = vunpack.c.l.bf16 %v25
    %v28 = vld [vmem:[%s2] sm:$0x3]
    %v29 = vld [vmem:[%s3] sm:$0xff]
    %v30 = vld [vmem:[%s3 + $0x8] sm:$0xff]
    %v31 = vld [vmem:[%s4 + $0x8] sm:$0xff]
    %v32 = vpack.c.bf16 %v23, %v22
    %v33 = vld [vmem:[%s4] sm:$0xff]
    %v34 = vpack.c.bf16 %v33, %v33
    %vm35 = vcmask 64512
    %v37 = vsel %vm35, %v32, 0
    %vm39 = vcmask 1043456
    %v41 = vsel %vm39, %v34, 0
    %43 = vmatprep.subr.bf16.mxu0 0
    %44 = vmatpush1.bf16.msra.mxu0 0
    %45 = vmatprep.subr.bf16.mxu0 0
    %46 = vmatpush1.bf16.msra.mxu0 0
    %47 = vmatprep.subr.bf16.mxu0 0
    %48 = vmatpush1.bf16.msra.mxu0 0
    %49 = vmatprep.subr.bf16.mxu0 0
    %50 = vmatpush1.bf16.msra.mxu0 0
    %51 = vmatprep.subr.bf16.mxu0 0
    %52 = vmatpush1.bf16.msra.mxu0 0
    %53 = vmatprep.subr.bf16.mxu0 0
    %54 = vmatpush1.bf16.msra.mxu0 0
    %55 = vmatprep.subr.bf16.mxu0 0
    %56 = vmatpush1.bf16.msra.mxu0 0
    %57 = vmatprep.subr.bf16.mxu0 0
    %58 = vmatpush1.bf16.msra.mxu0 %v41
    %59 = vmatprep.subr.bf16.mxu0 0
    %60 = vmatpush2.bf16.msra.mxu0 0
    %61 = vmatprep.subr.bf16.mxu0 0
    %62 = vmatpush2.bf16.msra.mxu0 0
    %63 = vmatprep.subr.bf16.mxu0 0
    %64 = vmatpush2.bf16.msra.mxu0 0
    %65 = vmatprep.subr.bf16.mxu0 0
    %66 = vmatpush2.bf16.msra.mxu0 0
    %67 = vmatprep.subr.bf16.mxu0 0
    %68 = vmatpush2.bf16.msra.mxu0 0
    %69 = vmatprep.subr.bf16.mxu0 0
    %70 = vmatpush2.bf16.msra.mxu0 0
    %71 = vmatprep.subr.bf16.mxu0 0
    %72 = vmatpush2.bf16.msra.mxu0 0
    %73 = vmatprep.subr.bf16.mxu0 0
    %74 = vmatpush2.bf16.msra.mxu0 0
    %75 = vmatprep.mubr.bf16.mxu0 0
    %76 = vmatmul.mubr.bf16.gmra.mxu0 %v37
    %v77 = vpop.f32.mrf.mxu0
    %v78 = vadd.f32 0.0, %v77
    %v79 = vpop.f32.mrf.mxu0
    %v80 = vpop.f32.mrf.mxu0
    %v81 = vadd.f32 0.0, %v80
    %v82 = vpop.f32.mrf.mxu0
    %83 = vdwg.mxu0
    %v84 = vlaneseq
    %v85 = vshrl.u32 %v84, 7
    %v86 = vsub.s32 1, %v85
    %v87 = vrot.slane %v31, %v86
    %v88 = vmul.f32 %v78, %v87
    %v89 = vmul.f32 %v81, %v87
    %90 = vadd.xlane.f32.xlu0 %v88
    %v91 = vpop.xlane.xlu0 %90
    %92 = vadd.xlane.f32.xlu0 %v89
    %v93 = vpop.xlane.xlu0 %92
    %94 = vmatprep.subr.mxu0 0.0
    %95 = vmatpush1.xpose.msra.mxu0 0.0
    %96 = vmatprep.subr.mxu0 0.0
    %97 = vmatpush1.xpose.msra.mxu0 0.0
    %98 = vmatprep.subr.mxu0 0.0
    %99 = vmatpush1.xpose.msra.mxu0 0.0
    %100 = vmatprep.subr.mxu0 0.0
    %101 = vmatpush1.xpose.msra.mxu0 0.0
    %102 = vmatprep.subr.mxu0 0.0
    %103 = vmatpush1.xpose.msra.mxu0 0.0
    %104 = vmatprep.subr.mxu0 0.0
    %105 = vmatpush1.xpose.msra.mxu0 0.0
    %106 = vmatprep.subr.mxu0 0.0
    %107 = vmatpush1.xpose.msra.mxu0 0.0
    %108 = vmatprep.subr.mxu0 0.0
    %109 = vmatpush1.xpose.msra.mxu0 0.0
    %110 = vmatprep.subr.mxu0 0.0
    %111 = vmatpush1.xpose.msra.mxu0 0.0
    %112 = vmatprep.subr.mxu0 0.0
    %113 = vmatpush1.xpose.msra.mxu0 0.0
    %114 = vmatprep.subr.mxu0 0.0
    %115 = vmatpush1.xpose.msra.mxu0 0.0
    %116 = vmatprep.subr.mxu0 0.0
    %117 = vmatpush1.xpose.msra.mxu0 0.0
    %118 = vmatprep.subr.mxu0 0.0
    %119 = vmatpush1.xpose.msra.mxu0 0.0
    %120 = vmatprep.subr.mxu0 0.0
    %121 = vmatpush1.xpose.msra.mxu0 0.0
    %122 = vmatprep.subr.mxu0 0.0
    %123 = vmatpush1.xpose.msra.mxu0 %v81
    %124 = vmatprep.subr.mxu0 0.0
    %125 = vmatpush1.xpose.msra.mxu0 %v78
    %126 = vmatprep.subr.mxu0 0.0
    %127 = vmatpush2.xpose.msra.mxu0 0.0
    %128 = vmatprep.subr.mxu0 0.0
    %129 = vmatpush2.xpose.msra.mxu0 0.0
    %130 = vmatprep.subr.mxu0 0.0
    %131 = vmatpush2.xpose.msra.mxu0 0.0
    %132 = vmatprep.subr.mxu0 0.0
    %133 = vmatpush2.xpose.msra.mxu0 0.0
    %134 = vmatprep.subr.mxu0 0.0
    %135 = vmatpush2.xpose.msra.mxu0 0.0
    %136 = vmatprep.subr.mxu0 0.0
    %137 = vmatpush2.xpose.msra.mxu0 0.0
    %138 = vmatprep.subr.mxu0 0.0
    %139 = vmatpush2.xpose.msra.mxu0 0.0
    %140 = vmatprep.subr.mxu0 0.0
    %141 = vmatpush2.xpose.msra.mxu0 0.0
    %142 = vmatprep.subr.mxu0 0.0
    %143 = vmatpush2.xpose.msra.mxu0 0.0
    %144 = vmatprep.subr.mxu0 0.0
    %145 = vmatpush2.xpose.msra.mxu0 0.0
    %146 = vmatprep.subr.mxu0 0.0
    %147 = vmatpush2.xpose.msra.mxu0 0.0
    %148 = vmatprep.subr.mxu0 0.0
    %149 = vmatpush2.xpose.msra.mxu0 0.0
    %150 = vmatprep.subr.mxu0 0.0
    %151 = vmatpush2.xpose.msra.mxu0 0.0
    %152 = vmatprep.subr.mxu0 0.0
    %153 = vmatpush2.xpose.msra.mxu0 0.0
    %154 = vmatprep.subr.mxu0 0.0
    %155 = vmatpush2.xpose.msra.mxu0 0.0
    %156 = vmatprep.subr.mxu0 0.0
    %157 = vmatpush2.xpose.msra.mxu0 0.0
    %158 = vmatprep.mubr.f32.mxu0 0.0
    %159 = vmatmul.mubr.f32.gmra.mxu0 %v31
    %v160 = vpop.f32.mrf.mxu0
    %v161 = vadd.f32 0.0, %v160
    %v162 = vpop.f32.mrf.mxu0
    %163 = vdwg.mxu0
    %v164 = vlaneseq
    %v165 = vshrl.u32 %v164, 7
    %v166 = vsub.s32 0, %v165
    %v167 = vrot.slane %v161, %v166
    %v168 = vadd.f32 %v91, %v167
    %v169 = vadd.f32 %v93, %v167
    %v170 = vmul.f32 %v168, 0.2
    %v171 = vmul.f32 %v169, 0.2
    %v172 = vmax.f32 %v168, %v170
    %v173 = vmax.f32 %v169, %v171
    %v174 = vadd.f32 %v172, %v26
    %v175 = vadd.f32 %v173, %v27
    %vm176 = vcmask 130048
    %v177 = vsel %vm176, %v174, -inf
    %178 = vmax.xlane.f32.xlu0 %v177
    %v179 = vpop.xlane.xlu0 %178
    %v180 = vsel %vm176, %v175, -inf
    %181 = vmax.xlane.f32.xlu0 %v180
    %v182 = vpop.xlane.xlu0 %181
    %v183 = vsub.f32 %v174, %v179
    %v184 = vsub.f32 %v175, %v182
    %v185 = vmul.f32 %v183, 1.442695
    %v186 = vpow.pop %v185
    %v187 = vmul.f32 %v184, 1.442695
    %v188 = vpow.pop %v187
    %v189 = vsel %vm176, %v186, 0.0
    %190 = vadd.xlane.f32.xlu0 %v189
    %v191 = vpop.xlane.xlu0 %190
    %v192 = vsel %vm176, %v188, 0.0
    %193 = vadd.xlane.f32.xlu0 %v192
    %v194 = vpop.xlane.xlu0 %193
    %v195 = vpack.c.bf16 %v188, %v186
    %v196 = vpack.c.bf16 %v81, %v78
    %v198 = vsel %vm176, %v195, 0
    %200 = vmatprep.subr.bf16.mxu0 0
    %201 = vmatpush1.bf16.msra.mxu0 0
    %202 = vmatprep.subr.bf16.mxu0 0
    %203 = vmatpush1.bf16.msra.mxu0 0
    %204 = vmatprep.subr.bf16.mxu0 0
    %205 = vmatpush1.bf16.msra.mxu0 0
    %206 = vmatprep.subr.bf16.mxu0 0
    %207 = vmatpush1.bf16.msra.mxu0 0
    %208 = vmatprep.subr.bf16.mxu0 0
    %209 = vmatpush1.bf16.msra.mxu0 0
    %210 = vmatprep.subr.bf16.mxu0 0
    %211 = vmatpush1.bf16.msra.mxu0 0
    %212 = vmatprep.subr.bf16.mxu0 0
    %213 = vmatpush1.bf16.msra.mxu0 0
    %214 = vmatprep.subr.bf16.mxu0 0
    %215 = vmatpush1.bf16.msra.mxu0 %v196
    %216 = vmatprep.subr.bf16.mxu0 0
    %217 = vmatpush2.bf16.msra.mxu0 0
    %218 = vmatprep.subr.bf16.mxu0 0
    %219 = vmatpush2.bf16.msra.mxu0 0
    %220 = vmatprep.subr.bf16.mxu0 0
    %221 = vmatpush2.bf16.msra.mxu0 0
    %222 = vmatprep.subr.bf16.mxu0 0
    %223 = vmatpush2.bf16.msra.mxu0 0
    %224 = vmatprep.subr.bf16.mxu0 0
    %225 = vmatpush2.bf16.msra.mxu0 0
    %226 = vmatprep.subr.bf16.mxu0 0
    %227 = vmatpush2.bf16.msra.mxu0 0
    %228 = vmatprep.subr.bf16.mxu0 0
    %229 = vmatpush2.bf16.msra.mxu0 0
    %230 = vmatprep.subr.bf16.mxu0 0
    %231 = vmatpush2.bf16.msra.mxu0 0
    %232 = vmatprep.mubr.bf16.mxu0 0
    %233 = vmatmul.mubr.bf16.gmra.mxu0 %v198
    %v234 = vpop.f32.mrf.mxu0
    %v235 = vadd.f32 0.0, %v234
    %v236 = vpop.f32.mrf.mxu0
    %v237 = vpop.f32.mrf.mxu0
    %v238 = vadd.f32 0.0, %v237
    %v239 = vpop.f32.mrf.mxu0
    %240 = vdwg.mxu0
    %v241 = vrcp.pop %v191
    %v242 = vrcp.pop %v194
    %v243 = vmul.f32 %v235, %v241
    %v244 = vmul.f32 %v238, %v242
    %v245 = vlaneseq
    %v246 = vshrl.u32 %v245, 7
    %v247 = vsub.s32 2, %v246
    %v248 = vrot.slane %v31, %v247
    %v249 = vadd.f32 %v243, %v248
    %v250 = vadd.f32 %v244, %v248
    %v251 = vmul.f32 %v249, 0.01
    %v252 = vmul.f32 %v250, 0.01
    %v253 = vmax.f32 %v249, %v251
    %v254 = vmax.f32 %v250, %v252
    %v255 = vld [vmem:[%s4 + $0x90] sm:$0xff]
    %v256 = vpack.c.bf16 %v254, %v253
    %v257 = vld [vmem:[%s4 + $0x10] sm:$0xff]
    %v258 = vld [vmem:[%s4 + $0x18] sm:$0xff]
    %v259 = vld [vmem:[%s4 + $0x20] sm:$0xff]
    %v260 = vld [vmem:[%s4 + $0x28] sm:$0xff]
    %v261 = vld [vmem:[%s4 + $0x30] sm:$0xff]
    %v262 = vld [vmem:[%s4 + $0x38] sm:$0xff]
    %v263 = vld [vmem:[%s4 + $0x40] sm:$0xff]
    %v264 = vld [vmem:[%s4 + $0x48] sm:$0xff]
    %v265 = vld [vmem:[%s4 + $0x50] sm:$0xff]
    %v266 = vld [vmem:[%s4 + $0x58] sm:$0xff]
    %v267 = vld [vmem:[%s4 + $0x60] sm:$0xff]
    %v268 = vld [vmem:[%s4 + $0x68] sm:$0xff]
    %v269 = vld [vmem:[%s4 + $0x70] sm:$0xff]
    %v270 = vld [vmem:[%s4 + $0x78] sm:$0xff]
    %v271 = vld [vmem:[%s4 + $0x80] sm:$0xff]
    %v272 = vld [vmem:[%s4 + $0x88] sm:$0xff]
    %v273 = vpack.c.bf16 %v258, %v257
    %v274 = vpack.c.bf16 %v260, %v259
    %v275 = vpack.c.bf16 %v262, %v261
    %v276 = vpack.c.bf16 %v264, %v263
    %v277 = vpack.c.bf16 %v266, %v265
    %v278 = vpack.c.bf16 %v268, %v267
    %v279 = vpack.c.bf16 %v270, %v269
    %v280 = vpack.c.bf16 %v272, %v271
    %281 = vmatprep.subr.bf16.mxu0 0
    %282 = vmatpush1.bf16.msra.mxu0 %v280
    %283 = vmatprep.subr.bf16.mxu0 0
    %284 = vmatpush1.bf16.msra.mxu0 %v279
    %285 = vmatprep.subr.bf16.mxu0 0
    %286 = vmatpush1.bf16.msra.mxu0 %v278
    %287 = vmatprep.subr.bf16.mxu0 0
    %288 = vmatpush1.bf16.msra.mxu0 %v277
    %289 = vmatprep.subr.bf16.mxu0 0
    %290 = vmatpush1.bf16.msra.mxu0 %v276
    %291 = vmatprep.subr.bf16.mxu0 0
    %292 = vmatpush1.bf16.msra.mxu0 %v275
    %293 = vmatprep.subr.bf16.mxu0 0
    %294 = vmatpush1.bf16.msra.mxu0 %v274
    %295 = vmatprep.subr.bf16.mxu0 0
    %296 = vmatpush1.bf16.msra.mxu0 %v273
    %297 = vmatprep.subr.bf16.mxu0 0
    %298 = vmatpush2.bf16.msra.mxu0 0
    %299 = vmatprep.subr.bf16.mxu0 0
    %300 = vmatpush2.bf16.msra.mxu0 0
    %301 = vmatprep.subr.bf16.mxu0 0
    %302 = vmatpush2.bf16.msra.mxu0 0
    %303 = vmatprep.subr.bf16.mxu0 0
    %304 = vmatpush2.bf16.msra.mxu0 0
    %305 = vmatprep.subr.bf16.mxu0 0
    %306 = vmatpush2.bf16.msra.mxu0 0
    %307 = vmatprep.subr.bf16.mxu0 0
    %308 = vmatpush2.bf16.msra.mxu0 0
    %309 = vmatprep.subr.bf16.mxu0 0
    %310 = vmatpush2.bf16.msra.mxu0 0
    %311 = vmatprep.subr.bf16.mxu0 0
    %312 = vmatpush2.bf16.msra.mxu0 0
    %313 = vmatprep.mubr.bf16.mxu0 0
    %314 = vmatmul.mubr.bf16.gmra.mxu0 %v256
    %v315 = vpop.f32.mrf.mxu0
    %v316 = vadd.f32 0.0, %v315
    %v317 = vpop.f32.mrf.mxu0
    %v318 = vpop.f32.mrf.mxu0
    %v319 = vadd.f32 0.0, %v318
    %v320 = vpop.f32.mrf.mxu0
    %321 = vdwg.mxu0
    %v322 = vlaneseq
    %v323 = vshrl.u32 %v322, 7
    %v324 = vsub.s32 1, %v323
    %v325 = vrot.slane %v255, %v324
    %v326 = vmul.f32 %v316, %v325
    %v327 = vmul.f32 %v319, %v325
    %328 = vadd.xlane.f32.xlu0 %v326
    %v329 = vpop.xlane.xlu0 %328
    %330 = vadd.xlane.f32.xlu0 %v327
    %v331 = vpop.xlane.xlu0 %330
    %332 = vmatprep.subr.mxu0 0.0
    %333 = vmatpush1.xpose.msra.mxu0 0.0
    %334 = vmatprep.subr.mxu0 0.0
    %335 = vmatpush1.xpose.msra.mxu0 0.0
    %336 = vmatprep.subr.mxu0 0.0
    %337 = vmatpush1.xpose.msra.mxu0 0.0
    %338 = vmatprep.subr.mxu0 0.0
    %339 = vmatpush1.xpose.msra.mxu0 0.0
    %340 = vmatprep.subr.mxu0 0.0
    %341 = vmatpush1.xpose.msra.mxu0 0.0
    %342 = vmatprep.subr.mxu0 0.0
    %343 = vmatpush1.xpose.msra.mxu0 0.0
    %344 = vmatprep.subr.mxu0 0.0
    %345 = vmatpush1.xpose.msra.mxu0 0.0
    %346 = vmatprep.subr.mxu0 0.0
    %347 = vmatpush1.xpose.msra.mxu0 0.0
    %348 = vmatprep.subr.mxu0 0.0
    %349 = vmatpush1.xpose.msra.mxu0 0.0
    %350 = vmatprep.subr.mxu0 0.0
    %351 = vmatpush1.xpose.msra.mxu0 0.0
    %352 = vmatprep.subr.mxu0 0.0
    %353 = vmatpush1.xpose.msra.mxu0 0.0
    %354 = vmatprep.subr.mxu0 0.0
    %355 = vmatpush1.xpose.msra.mxu0 0.0
    %356 = vmatprep.subr.mxu0 0.0
    %357 = vmatpush1.xpose.msra.mxu0 0.0
    %358 = vmatprep.subr.mxu0 0.0
    %359 = vmatpush1.xpose.msra.mxu0 0.0
    %360 = vmatprep.subr.mxu0 0.0
    %361 = vmatpush1.xpose.msra.mxu0 %v319
    %362 = vmatprep.subr.mxu0 0.0
    %363 = vmatpush1.xpose.msra.mxu0 %v316
    %364 = vmatprep.subr.mxu0 0.0
    %365 = vmatpush2.xpose.msra.mxu0 0.0
    %366 = vmatprep.subr.mxu0 0.0
    %367 = vmatpush2.xpose.msra.mxu0 0.0
    %368 = vmatprep.subr.mxu0 0.0
    %369 = vmatpush2.xpose.msra.mxu0 0.0
    %370 = vmatprep.subr.mxu0 0.0
    %371 = vmatpush2.xpose.msra.mxu0 0.0
    %372 = vmatprep.subr.mxu0 0.0
    %373 = vmatpush2.xpose.msra.mxu0 0.0
    %374 = vmatprep.subr.mxu0 0.0
    %375 = vmatpush2.xpose.msra.mxu0 0.0
    %376 = vmatprep.subr.mxu0 0.0
    %377 = vmatpush2.xpose.msra.mxu0 0.0
    %378 = vmatprep.subr.mxu0 0.0
    %379 = vmatpush2.xpose.msra.mxu0 0.0
    %380 = vmatprep.subr.mxu0 0.0
    %381 = vmatpush2.xpose.msra.mxu0 0.0
    %382 = vmatprep.subr.mxu0 0.0
    %383 = vmatpush2.xpose.msra.mxu0 0.0
    %384 = vmatprep.subr.mxu0 0.0
    %385 = vmatpush2.xpose.msra.mxu0 0.0
    %386 = vmatprep.subr.mxu0 0.0
    %387 = vmatpush2.xpose.msra.mxu0 0.0
    %388 = vmatprep.subr.mxu0 0.0
    %389 = vmatpush2.xpose.msra.mxu0 0.0
    %390 = vmatprep.subr.mxu0 0.0
    %391 = vmatpush2.xpose.msra.mxu0 0.0
    %392 = vmatprep.subr.mxu0 0.0
    %393 = vmatpush2.xpose.msra.mxu0 0.0
    %394 = vmatprep.subr.mxu0 0.0
    %395 = vmatpush2.xpose.msra.mxu0 0.0
    %396 = vmatprep.mubr.f32.mxu0 0.0
    %397 = vmatmul.mubr.f32.gmra.mxu0 %v255
    %v398 = vpop.f32.mrf.mxu0
    %v399 = vadd.f32 0.0, %v398
    %v400 = vpop.f32.mrf.mxu0
    %401 = vdwg.mxu0
    %v402 = vlaneseq
    %v403 = vshrl.u32 %v402, 7
    %v404 = vsub.s32 0, %v403
    %v405 = vrot.slane %v399, %v404
    %v406 = vadd.f32 %v329, %v405
    %v407 = vadd.f32 %v331, %v405
    %v408 = vmul.f32 %v406, 0.2
    %v409 = vmul.f32 %v407, 0.2
    %v410 = vmax.f32 %v406, %v408
    %v411 = vmax.f32 %v407, %v409
    %v412 = vadd.f32 %v410, %v26
    %v413 = vadd.f32 %v411, %v27
    %v414 = vsel %vm176, %v412, -inf
    %415 = vmax.xlane.f32.xlu0 %v414
    %v416 = vpop.xlane.xlu0 %415
    %v417 = vsel %vm176, %v413, -inf
    %418 = vmax.xlane.f32.xlu0 %v417
    %v419 = vpop.xlane.xlu0 %418
    %v420 = vsub.f32 %v412, %v416
    %v421 = vsub.f32 %v413, %v419
    %v422 = vmul.f32 %v420, 1.442695
    %v423 = vpow.pop %v422
    %v424 = vmul.f32 %v421, 1.442695
    %v425 = vpow.pop %v424
    %v426 = vsel %vm176, %v423, 0.0
    %427 = vadd.xlane.f32.xlu0 %v426
    %v428 = vpop.xlane.xlu0 %427
    %v429 = vsel %vm176, %v425, 0.0
    %430 = vadd.xlane.f32.xlu0 %v429
    %v431 = vpop.xlane.xlu0 %430
    %v432 = vpack.c.bf16 %v425, %v423
    %v433 = vpack.c.bf16 %v319, %v316
    %v435 = vsel %vm176, %v432, 0
    %437 = vmatprep.subr.bf16.mxu0 0
    %438 = vmatpush1.bf16.msra.mxu0 0
    %439 = vmatprep.subr.bf16.mxu0 0
    %440 = vmatpush1.bf16.msra.mxu0 0
    %441 = vmatprep.subr.bf16.mxu0 0
    %442 = vmatpush1.bf16.msra.mxu0 0
    %443 = vmatprep.subr.bf16.mxu0 0
    %444 = vmatpush1.bf16.msra.mxu0 0
    %445 = vmatprep.subr.bf16.mxu0 0
    %446 = vmatpush1.bf16.msra.mxu0 0
    %447 = vmatprep.subr.bf16.mxu0 0
    %448 = vmatpush1.bf16.msra.mxu0 0
    %449 = vmatprep.subr.bf16.mxu0 0
    %450 = vmatpush1.bf16.msra.mxu0 0
    %451 = vmatprep.subr.bf16.mxu0 0
    %452 = vmatpush1.bf16.msra.mxu0 %v433
    %453 = vmatprep.subr.bf16.mxu0 0
    %454 = vmatpush2.bf16.msra.mxu0 0
    %455 = vmatprep.subr.bf16.mxu0 0
    %456 = vmatpush2.bf16.msra.mxu0 0
    %457 = vmatprep.subr.bf16.mxu0 0
    %458 = vmatpush2.bf16.msra.mxu0 0
    %459 = vmatprep.subr.bf16.mxu0 0
    %460 = vmatpush2.bf16.msra.mxu0 0
    %461 = vmatprep.subr.bf16.mxu0 0
    %462 = vmatpush2.bf16.msra.mxu0 0
    %463 = vmatprep.subr.bf16.mxu0 0
    %464 = vmatpush2.bf16.msra.mxu0 0
    %465 = vmatprep.subr.bf16.mxu0 0
    %466 = vmatpush2.bf16.msra.mxu0 0
    %467 = vmatprep.subr.bf16.mxu0 0
    %468 = vmatpush2.bf16.msra.mxu0 0
    %469 = vmatprep.mubr.bf16.mxu0 0
    %470 = vmatmul.mubr.bf16.gmra.mxu0 %v435
    %v471 = vpop.f32.mrf.mxu0
    %v472 = vadd.f32 0.0, %v471
    %v473 = vpop.f32.mrf.mxu0
    %v474 = vpop.f32.mrf.mxu0
    %v475 = vadd.f32 0.0, %v474
    %v476 = vpop.f32.mrf.mxu0
    %477 = vdwg.mxu0
    %v478 = vrcp.pop %v428
    %v479 = vrcp.pop %v431
    %v480 = vmul.f32 %v472, %v478
    %v481 = vmul.f32 %v475, %v479
    %v482 = vlaneseq
    %v483 = vshrl.u32 %v482, 7
    %v484 = vsub.s32 2, %v483
    %v485 = vrot.slane %v255, %v484
    %v486 = vadd.f32 %v480, %v485
    %v487 = vadd.f32 %v481, %v485
    %v488 = vmul.f32 %v486, 0.01
    %v489 = vmul.f32 %v487, 0.01
    %v490 = vmax.f32 %v486, %v488
    %v491 = vmax.f32 %v487, %v489
    %vm492 = vcmask 123904
    %v493 = vsel %vm492, %v28, 0.0
    %494 = vadd.xlane.f32.xlu0 %v493
    %v495 = vpop.xlane.xlu0 %494
    %v496 = vmax.f32 %v495, 1.0
    %v498 = vsel %vm176, %v28, 0
    %500 = vmatprep.subr.mxu0 0.0
    %501 = vmatpush1.msra.mxu0 0.0
    %502 = vmatprep.subr.mxu0 0.0
    %503 = vmatpush1.msra.mxu0 0.0
    %504 = vmatprep.subr.mxu0 0.0
    %505 = vmatpush1.msra.mxu0 0.0
    %506 = vmatprep.subr.mxu0 0.0
    %507 = vmatpush1.msra.mxu0 0.0
    %508 = vmatprep.subr.mxu0 0.0
    %509 = vmatpush1.msra.mxu0 0.0
    %510 = vmatprep.subr.mxu0 0.0
    %511 = vmatpush1.msra.mxu0 0.0
    %512 = vmatprep.subr.mxu0 0.0
    %513 = vmatpush1.msra.mxu0 0.0
    %514 = vmatprep.subr.mxu0 0.0
    %515 = vmatpush1.msra.mxu0 0.0
    %516 = vmatprep.subr.mxu0 0.0
    %517 = vmatpush1.msra.mxu0 0.0
    %518 = vmatprep.subr.mxu0 0.0
    %519 = vmatpush1.msra.mxu0 0.0
    %520 = vmatprep.subr.mxu0 0.0
    %521 = vmatpush1.msra.mxu0 0.0
    %522 = vmatprep.subr.mxu0 0.0
    %523 = vmatpush1.msra.mxu0 0.0
    %524 = vmatprep.subr.mxu0 0.0
    %525 = vmatpush1.msra.mxu0 0.0
    %526 = vmatprep.subr.mxu0 0.0
    %527 = vmatpush1.msra.mxu0 0.0
    %528 = vmatprep.subr.mxu0 0.0
    %529 = vmatpush1.msra.mxu0 %v491
    %530 = vmatprep.subr.mxu0 0.0
    %531 = vmatpush1.msra.mxu0 %v490
    %532 = vmatprep.subr.mxu0 0.0
    %533 = vmatpush2.msra.mxu0 0.0
    %534 = vmatprep.subr.mxu0 0.0
    %535 = vmatpush2.msra.mxu0 0.0
    %536 = vmatprep.subr.mxu0 0.0
    %537 = vmatpush2.msra.mxu0 0.0
    %538 = vmatprep.subr.mxu0 0.0
    %539 = vmatpush2.msra.mxu0 0.0
    %540 = vmatprep.subr.mxu0 0.0
    %541 = vmatpush2.msra.mxu0 0.0
    %542 = vmatprep.subr.mxu0 0.0
    %543 = vmatpush2.msra.mxu0 0.0
    %544 = vmatprep.subr.mxu0 0.0
    %545 = vmatpush2.msra.mxu0 0.0
    %546 = vmatprep.subr.mxu0 0.0
    %547 = vmatpush2.msra.mxu0 0.0
    %548 = vmatprep.subr.mxu0 0.0
    %549 = vmatpush2.msra.mxu0 0.0
    %550 = vmatprep.subr.mxu0 0.0
    %551 = vmatpush2.msra.mxu0 0.0
    %552 = vmatprep.subr.mxu0 0.0
    %553 = vmatpush2.msra.mxu0 0.0
    %554 = vmatprep.subr.mxu0 0.0
    %555 = vmatpush2.msra.mxu0 0.0
    %556 = vmatprep.subr.mxu0 0.0
    %557 = vmatpush2.msra.mxu0 0.0
    %558 = vmatprep.subr.mxu0 0.0
    %559 = vmatpush2.msra.mxu0 0.0
    %560 = vmatprep.subr.mxu0 0.0
    %561 = vmatpush2.msra.mxu0 0.0
    %562 = vmatprep.subr.mxu0 0.0
    %563 = vmatpush2.msra.mxu0 0.0
    %564 = vmatprep.mubr.f32.mxu0 0.0
    %565 = vmatmul.mubr.f32.gmra.mxu0 %v498
    %v566 = vpop.f32.mrf.mxu0
    %v567 = vadd.f32 0.0, %v566
    %v568 = vpop.f32.mrf.mxu0
    %569 = vdwg.mxu0
    %v570 = vrcp.pop %v496
    %v571 = vmul.f32 %v567, %v570
    %573 = vset.pattern.permute.xlu0 0
    %574 = vperm.xlu0 %573, %v29
    %v575 = vpop.permute.xlu0 %574
    %578 = vset.pattern.permute.xlu0 0
    %579 = vperm.xlu0 %578, %v30
    %v580 = vpop.permute.xlu0 %579
    %v582 = vadd.f32 %v490, %v575
    %v583 = vadd.f32 %v491, %v580
    %v584 = vmax.f32 %v582, %v583
    %v585 = vrot.slane %v584, 4
    %v586 = vmax.f32 %v584, %v585
    %v587 = vrot.slane %v586, 2
    %v588 = vmax.f32 %v586, %v587
    %v589 = vrot.slane %v588, 1
    %v590 = vmax.f32 %v588, %v589
    %591 = vset.pattern.permute.xlu0 1
    %592 = vperm.xlu0 %591, %v29
    %v593 = vpop.permute.xlu0 %592
    %595 = vset.pattern.permute.xlu0 1
    %596 = vperm.xlu0 %595, %v30
    %v597 = vpop.permute.xlu0 %596
    %v599 = vadd.f32 %v490, %v593
    %v600 = vadd.f32 %v491, %v597
    %v601 = vmax.f32 %v599, %v600
    %v602 = vrot.slane %v601, 4
    %v603 = vmax.f32 %v601, %v602
    %v604 = vrot.slane %v603, 2
    %v605 = vmax.f32 %v603, %v604
    %v606 = vrot.slane %v605, 1
    %v607 = vmax.f32 %v605, %v606
    %vm608 = vcmask 1040384
    %v609 = vsel %vm608, %v590, %v607
    %v610 = vld [vmem:[%s4 + $0x98] sm:$0xff]
    %v611 = vld [vmem:[%s4 + $0xa0] sm:$0xff]
    %v612 = vld [vmem:[%s4 + $0xa8] sm:$0xff]
    %v613 = vld [vmem:[%s4 + $0xb0] sm:$0xff]
    %v614 = vld [vmem:[%s4 + $0xb8] sm:$0xff]
    %v615 = vld [vmem:[%s4 + $0xc0] sm:$0xff]
    %v616 = vld [vmem:[%s4 + $0xc8] sm:$0xff]
    %v617 = vld [vmem:[%s4 + $0xd0] sm:$0xff]
    %v618 = vld [vmem:[%s4 + $0xd8] sm:$0xff]
    %v619 = vld [vmem:[%s4 + $0xe0] sm:$0xff]
    %v620 = vld [vmem:[%s4 + $0xe8] sm:$0xff]
    %v621 = vld [vmem:[%s4 + $0xf0] sm:$0xff]
    %v622 = vld [vmem:[%s4 + $0xf8] sm:$0xff]
    %v623 = vld [vmem:[%s4 + $0x100] sm:$0xff]
    %v624 = vld [vmem:[%s4 + $0x108] sm:$0xff]
    %v625 = vld [vmem:[%s4 + $0x110] sm:$0xff]
    %v626 = vld [vmem:[%s4 + $0x118] sm:$0xff]
    %v627 = vld [vmem:[%s4 + $0x120] sm:$0xff]
    %v628 = vld [vmem:[%s4 + $0x128] sm:$0xff]
    %v629 = vld [vmem:[%s4 + $0x130] sm:$0xff]
    %v630 = vld [vmem:[%s4 + $0x138] sm:$0xff]
    %v631 = vld [vmem:[%s4 + $0x140] sm:$0xff]
    %v632 = vld [vmem:[%s4 + $0x148] sm:$0xff]
    %v633 = vld [vmem:[%s4 + $0x150] sm:$0xff]
    %v634 = vld [vmem:[%s4 + $0x158] sm:$0xff]
    %v635 = vld [vmem:[%s4 + $0x160] sm:$0xff]
    %v636 = vld [vmem:[%s4 + $0x168] sm:$0xff]
    %v637 = vld [vmem:[%s4 + $0x170] sm:$0xff]
    %v638 = vld [vmem:[%s4 + $0x178] sm:$0xff]
    %v639 = vld [vmem:[%s4 + $0x180] sm:$0xff]
    %v640 = vld [vmem:[%s4 + $0x188] sm:$0xff]
    %v641 = vld [vmem:[%s4 + $0x190] sm:$0xff]
    %642 = vmatprep.subr.mxu0 0.0
    %643 = vmatpush1.msra.mxu0 %v641
    %644 = vmatprep.subr.mxu0 0.0
    %645 = vmatpush1.msra.mxu0 %v640
    %646 = vmatprep.subr.mxu0 0.0
    %647 = vmatpush1.msra.mxu0 %v639
    %648 = vmatprep.subr.mxu0 0.0
    %649 = vmatpush1.msra.mxu0 %v638
    %650 = vmatprep.subr.mxu0 0.0
    %651 = vmatpush1.msra.mxu0 %v637
    %652 = vmatprep.subr.mxu0 0.0
    %653 = vmatpush1.msra.mxu0 %v636
    %654 = vmatprep.subr.mxu0 0.0
    %655 = vmatpush1.msra.mxu0 %v635
    %656 = vmatprep.subr.mxu0 0.0
    %657 = vmatpush1.msra.mxu0 %v634
    %658 = vmatprep.subr.mxu0 0.0
    %659 = vmatpush1.msra.mxu0 %v633
    %660 = vmatprep.subr.mxu0 0.0
    %661 = vmatpush1.msra.mxu0 %v632
    %662 = vmatprep.subr.mxu0 0.0
    %663 = vmatpush1.msra.mxu0 %v631
    %664 = vmatprep.subr.mxu0 0.0
    %665 = vmatpush1.msra.mxu0 %v630
    %666 = vmatprep.subr.mxu0 0.0
    %667 = vmatpush1.msra.mxu0 %v629
    %668 = vmatprep.subr.mxu0 0.0
    %669 = vmatpush1.msra.mxu0 %v628
    %670 = vmatprep.subr.mxu0 0.0
    %671 = vmatpush1.msra.mxu0 %v627
    %672 = vmatprep.subr.mxu0 0.0
    %673 = vmatpush1.msra.mxu0 %v626
    %674 = vmatprep.subr.mxu0 0.0
    %675 = vmatpush2.msra.mxu0 0.0
    %676 = vmatprep.subr.mxu0 0.0
    %677 = vmatpush2.msra.mxu0 0.0
    %678 = vmatprep.subr.mxu0 0.0
    %679 = vmatpush2.msra.mxu0 0.0
    %680 = vmatprep.subr.mxu0 0.0
    %681 = vmatpush2.msra.mxu0 0.0
    %682 = vmatprep.subr.mxu0 0.0
    %683 = vmatpush2.msra.mxu0 0.0
    %684 = vmatprep.subr.mxu0 0.0
    %685 = vmatpush2.msra.mxu0 0.0
    %686 = vmatprep.subr.mxu0 0.0
    %687 = vmatpush2.msra.mxu0 0.0
    %688 = vmatprep.subr.mxu0 0.0
    %689 = vmatpush2.msra.mxu0 0.0
    %690 = vmatprep.subr.mxu0 0.0
    %691 = vmatpush2.msra.mxu0 0.0
    %692 = vmatprep.subr.mxu0 0.0
    %693 = vmatpush2.msra.mxu0 0.0
    %694 = vmatprep.subr.mxu0 0.0
    %695 = vmatpush2.msra.mxu0 0.0
    %696 = vmatprep.subr.mxu0 0.0
    %697 = vmatpush2.msra.mxu0 0.0
    %698 = vmatprep.subr.mxu0 0.0
    %699 = vmatpush2.msra.mxu0 0.0
    %700 = vmatprep.subr.mxu0 0.0
    %701 = vmatpush2.msra.mxu0 0.0
    %702 = vmatprep.subr.mxu0 0.0
    %703 = vmatpush2.msra.mxu0 0.0
    %704 = vmatprep.subr.mxu0 0.0
    %705 = vmatpush2.msra.mxu0 0.0
    %706 = vmatprep.mubr.f32.mxu0 0.0
    %707 = vmatmul.mubr.f32.gmra.mxu0 %v609
    %v708 = vpop.f32.mrf.mxu0
    %v709 = vadd.f32 0.0, %v708
    %v710 = vpop.f32.mrf.mxu0
    %711 = vdwg.mxu0
    %712 = vmatprep.subr.mxu0 0.0
    %713 = vmatpush1.msra.mxu0 %v625
    %714 = vmatprep.subr.mxu0 0.0
    %715 = vmatpush1.msra.mxu0 %v624
    %716 = vmatprep.subr.mxu0 0.0
    %717 = vmatpush1.msra.mxu0 %v623
    %718 = vmatprep.subr.mxu0 0.0
    %719 = vmatpush1.msra.mxu0 %v622
    %720 = vmatprep.subr.mxu0 0.0
    %721 = vmatpush1.msra.mxu0 %v621
    %722 = vmatprep.subr.mxu0 0.0
    %723 = vmatpush1.msra.mxu0 %v620
    %724 = vmatprep.subr.mxu0 0.0
    %725 = vmatpush1.msra.mxu0 %v619
    %726 = vmatprep.subr.mxu0 0.0
    %727 = vmatpush1.msra.mxu0 %v618
    %728 = vmatprep.subr.mxu0 0.0
    %729 = vmatpush1.msra.mxu0 %v617
    %730 = vmatprep.subr.mxu0 0.0
    %731 = vmatpush1.msra.mxu0 %v616
    %732 = vmatprep.subr.mxu0 0.0
    %733 = vmatpush1.msra.mxu0 %v615
    %734 = vmatprep.subr.mxu0 0.0
    %735 = vmatpush1.msra.mxu0 %v614
    %736 = vmatprep.subr.mxu0 0.0
    %737 = vmatpush1.msra.mxu0 %v613
    %738 = vmatprep.subr.mxu0 0.0
    %739 = vmatpush1.msra.mxu0 %v612
    %740 = vmatprep.subr.mxu0 0.0
    %741 = vmatpush1.msra.mxu0 %v611
    %742 = vmatprep.subr.mxu0 0.0
    %743 = vmatpush1.msra.mxu0 %v610
    %744 = vmatprep.subr.mxu0 0.0
    %745 = vmatpush2.msra.mxu0 0.0
    %746 = vmatprep.subr.mxu0 0.0
    %747 = vmatpush2.msra.mxu0 0.0
    %748 = vmatprep.subr.mxu0 0.0
    %749 = vmatpush2.msra.mxu0 0.0
    %750 = vmatprep.subr.mxu0 0.0
    %751 = vmatpush2.msra.mxu0 0.0
    %752 = vmatprep.subr.mxu0 0.0
    %753 = vmatpush2.msra.mxu0 0.0
    %754 = vmatprep.subr.mxu0 0.0
    %755 = vmatpush2.msra.mxu0 0.0
    %756 = vmatprep.subr.mxu0 0.0
    %757 = vmatpush2.msra.mxu0 0.0
    %758 = vmatprep.subr.mxu0 0.0
    %759 = vmatpush2.msra.mxu0 0.0
    %760 = vmatprep.subr.mxu0 0.0
    %761 = vmatpush2.msra.mxu0 0.0
    %762 = vmatprep.subr.mxu0 0.0
    %763 = vmatpush2.msra.mxu0 0.0
    %764 = vmatprep.subr.mxu0 0.0
    %765 = vmatpush2.msra.mxu0 0.0
    %766 = vmatprep.subr.mxu0 0.0
    %767 = vmatpush2.msra.mxu0 0.0
    %768 = vmatprep.subr.mxu0 0.0
    %769 = vmatpush2.msra.mxu0 0.0
    %770 = vmatprep.subr.mxu0 0.0
    %771 = vmatpush2.msra.mxu0 0.0
    %772 = vmatprep.subr.mxu0 0.0
    %773 = vmatpush2.msra.mxu0 0.0
    %774 = vmatprep.subr.mxu0 0.0
    %775 = vmatpush2.msra.mxu0 0.0
    %776 = vmatprep.mubr.f32.mxu0 0.0
    %777 = vmatmul.mubr.f32.gmra.mxu0 %v571
    %v778 = vpop.f32.mrf.mxu0
    %v779 = vadd.f32 %v709, %v778
    %v780 = vpop.f32.mrf.mxu0
    %781 = vdwg.mxu0
    %v782 = vld [vmem:[%s4 + $0x198] sm:$0xff]
    %v783 = vlaneseq
    %v784 = vshrl.u32 %v783, 7
    %v785 = vsub.s32 0, %v784
    %v786 = vrot.slane %v782, %v785
    %v787 = vadd.f32 %v779, %v786
    %v788 = vmul.f32 %v787, 0.01
    %v789 = vmax.f32 %v787, %v788
    %v790 = vld [vmem:[%s4 + $0x1a0] sm:$0xff]
    %v791 = vld [vmem:[%s4 + $0x1a8] sm:$0xff]
    %v792 = vld [vmem:[%s4 + $0x1b0] sm:$0xff]
    %v793 = vld [vmem:[%s4 + $0x1b8] sm:$0xff]
    %v794 = vld [vmem:[%s4 + $0x1c0] sm:$0xff]
    %v795 = vld [vmem:[%s4 + $0x1c8] sm:$0xff]
    %v796 = vld [vmem:[%s4 + $0x1d0] sm:$0xff]
    %v797 = vld [vmem:[%s4 + $0x1d8] sm:$0xff]
    %v798 = vld [vmem:[%s4 + $0x1e0] sm:$0xff]
    %v799 = vld [vmem:[%s4 + $0x1e8] sm:$0xff]
    %v800 = vld [vmem:[%s4 + $0x1f0] sm:$0xff]
    %v801 = vld [vmem:[%s4 + $0x1f8] sm:$0xff]
    %v802 = vld [vmem:[%s4 + $0x200] sm:$0xff]
    %v803 = vld [vmem:[%s4 + $0x208] sm:$0xff]
    %v804 = vld [vmem:[%s4 + $0x210] sm:$0xff]
    %v805 = vld [vmem:[%s4 + $0x218] sm:$0xff]
    %v806 = vld [vmem:[%s4 + $0x220] sm:$0xff]
    %v807 = vlaneseq
    %v808 = vshrl.u32 %v807, 7
    %v809 = vsub.s32 0, %v808
    %v810 = vrot.slane %v806, %v809
    %811 = vmatprep.subr.mxu0 0.0
    %812 = vmatpush1.msra.mxu0 %v805
    %813 = vmatprep.subr.mxu0 0.0
    %814 = vmatpush1.msra.mxu0 %v804
    %815 = vmatprep.subr.mxu0 0.0
    %816 = vmatpush1.msra.mxu0 %v803
    %817 = vmatprep.subr.mxu0 0.0
    %818 = vmatpush1.msra.mxu0 %v802
    %819 = vmatprep.subr.mxu0 0.0
    %820 = vmatpush1.msra.mxu0 %v801
    %821 = vmatprep.subr.mxu0 0.0
    %822 = vmatpush1.msra.mxu0 %v800
    %823 = vmatprep.subr.mxu0 0.0
    %824 = vmatpush1.msra.mxu0 %v799
    %825 = vmatprep.subr.mxu0 0.0
    %826 = vmatpush1.msra.mxu0 %v798
    %827 = vmatprep.subr.mxu0 0.0
    %828 = vmatpush1.msra.mxu0 %v797
    %829 = vmatprep.subr.mxu0 0.0
    %830 = vmatpush1.msra.mxu0 %v796
    %831 = vmatprep.subr.mxu0 0.0
    %832 = vmatpush1.msra.mxu0 %v795
    %833 = vmatprep.subr.mxu0 0.0
    %834 = vmatpush1.msra.mxu0 %v794
    %835 = vmatprep.subr.mxu0 0.0
    %836 = vmatpush1.msra.mxu0 %v793
    %837 = vmatprep.subr.mxu0 0.0
    %838 = vmatpush1.msra.mxu0 %v792
    %839 = vmatprep.subr.mxu0 0.0
    %840 = vmatpush1.msra.mxu0 %v791
    %841 = vmatprep.subr.mxu0 0.0
    %842 = vmatpush1.msra.mxu0 %v790
    %843 = vmatprep.subr.mxu0 0.0
    %844 = vmatpush2.msra.mxu0 0.0
    %845 = vmatprep.subr.mxu0 0.0
    %846 = vmatpush2.msra.mxu0 0.0
    %847 = vmatprep.subr.mxu0 0.0
    %848 = vmatpush2.msra.mxu0 0.0
    %849 = vmatprep.subr.mxu0 0.0
    %850 = vmatpush2.msra.mxu0 0.0
    %851 = vmatprep.subr.mxu0 0.0
    %852 = vmatpush2.msra.mxu0 0.0
    %853 = vmatprep.subr.mxu0 0.0
    %854 = vmatpush2.msra.mxu0 0.0
    %855 = vmatprep.subr.mxu0 0.0
    %856 = vmatpush2.msra.mxu0 0.0
    %857 = vmatprep.subr.mxu0 0.0
    %858 = vmatpush2.msra.mxu0 0.0
    %859 = vmatprep.subr.mxu0 0.0
    %860 = vmatpush2.msra.mxu0 0.0
    %861 = vmatprep.subr.mxu0 0.0
    %862 = vmatpush2.msra.mxu0 0.0
    %863 = vmatprep.subr.mxu0 0.0
    %864 = vmatpush2.msra.mxu0 0.0
    %865 = vmatprep.subr.mxu0 0.0
    %866 = vmatpush2.msra.mxu0 0.0
    %867 = vmatprep.subr.mxu0 0.0
    %868 = vmatpush2.msra.mxu0 0.0
    %869 = vmatprep.subr.mxu0 0.0
    %870 = vmatpush2.msra.mxu0 0.0
    %871 = vmatprep.subr.mxu0 0.0
    %872 = vmatpush2.msra.mxu0 0.0
    %873 = vmatprep.subr.mxu0 0.0
    %874 = vmatpush2.msra.mxu0 0.0
    %875 = vmatprep.mubr.f32.mxu0 0.0
    %876 = vmatmul.mubr.f32.gmra.mxu0 %v789
    %v877 = vpop.f32.mrf.mxu0
    %v878 = vadd.f32 %v810, %v877
    %v879 = vpop.f32.mrf.mxu0
    %880 = vdwg.mxu0
    %v881 = vmul.f32 %v878, 0.01
    %v882 = vmax.f32 %v878, %v881
    %v883 = vld [vmem:[%s4 + $0x228] sm:$0xff]
    %v884 = vld [vmem:[%s4 + $0x230] sm:$0xff]
    %v885 = vld [vmem:[%s4 + $0x238] sm:$0xff]
    %v886 = vld [vmem:[%s4 + $0x240] sm:$0xff]
    %v887 = vld [vmem:[%s4 + $0x248] sm:$0xff]
    %v888 = vld [vmem:[%s4 + $0x250] sm:$0xff]
    %v889 = vld [vmem:[%s4 + $0x258] sm:$0xff]
    %v890 = vld [vmem:[%s4 + $0x260] sm:$0xff]
    %v891 = vld [vmem:[%s4 + $0x268] sm:$0xff]
    %v892 = vld [vmem:[%s4 + $0x270] sm:$0xff]
    %v893 = vld [vmem:[%s4 + $0x278] sm:$0xff]
    %v894 = vld [vmem:[%s4 + $0x280] sm:$0xff]
    %v895 = vld [vmem:[%s4 + $0x288] sm:$0xff]
    %v896 = vld [vmem:[%s4 + $0x290] sm:$0xff]
    %v897 = vld [vmem:[%s4 + $0x298] sm:$0xff]
    %v898 = vld [vmem:[%s4 + $0x2a0] sm:$0xff]
    %v899 = vld [vmem:[%s4 + $0x2a8] sm:$0xff]
    %v900 = vlaneseq
    %v901 = vshrl.u32 %v900, 7
    %v902 = vsub.s32 0, %v901
    %v903 = vrot.slane %v899, %v902
    %904 = vmatprep.subr.mxu0 0.0
    %905 = vmatpush1.msra.mxu0 %v898
    %906 = vmatprep.subr.mxu0 0.0
    %907 = vmatpush1.msra.mxu0 %v897
    %908 = vmatprep.subr.mxu0 0.0
    %909 = vmatpush1.msra.mxu0 %v896
    %910 = vmatprep.subr.mxu0 0.0
    %911 = vmatpush1.msra.mxu0 %v895
    %912 = vmatprep.subr.mxu0 0.0
    %913 = vmatpush1.msra.mxu0 %v894
    %914 = vmatprep.subr.mxu0 0.0
    %915 = vmatpush1.msra.mxu0 %v893
    %916 = vmatprep.subr.mxu0 0.0
    %917 = vmatpush1.msra.mxu0 %v892
    %918 = vmatprep.subr.mxu0 0.0
    %919 = vmatpush1.msra.mxu0 %v891
    %920 = vmatprep.subr.mxu0 0.0
    %921 = vmatpush1.msra.mxu0 %v890
    %922 = vmatprep.subr.mxu0 0.0
    %923 = vmatpush1.msra.mxu0 %v889
    %924 = vmatprep.subr.mxu0 0.0
    %925 = vmatpush1.msra.mxu0 %v888
    %926 = vmatprep.subr.mxu0 0.0
    %927 = vmatpush1.msra.mxu0 %v887
    %928 = vmatprep.subr.mxu0 0.0
    %929 = vmatpush1.msra.mxu0 %v886
    %930 = vmatprep.subr.mxu0 0.0
    %931 = vmatpush1.msra.mxu0 %v885
    %932 = vmatprep.subr.mxu0 0.0
    %933 = vmatpush1.msra.mxu0 %v884
    %934 = vmatprep.subr.mxu0 0.0
    %935 = vmatpush1.msra.mxu0 %v883
    %936 = vmatprep.subr.mxu0 0.0
    %937 = vmatpush2.msra.mxu0 0.0
    %938 = vmatprep.subr.mxu0 0.0
    %939 = vmatpush2.msra.mxu0 0.0
    %940 = vmatprep.subr.mxu0 0.0
    %941 = vmatpush2.msra.mxu0 0.0
    %942 = vmatprep.subr.mxu0 0.0
    %943 = vmatpush2.msra.mxu0 0.0
    %944 = vmatprep.subr.mxu0 0.0
    %945 = vmatpush2.msra.mxu0 0.0
    %946 = vmatprep.subr.mxu0 0.0
    %947 = vmatpush2.msra.mxu0 0.0
    %948 = vmatprep.subr.mxu0 0.0
    %949 = vmatpush2.msra.mxu0 0.0
    %950 = vmatprep.subr.mxu0 0.0
    %951 = vmatpush2.msra.mxu0 0.0
    %952 = vmatprep.subr.mxu0 0.0
    %953 = vmatpush2.msra.mxu0 0.0
    %954 = vmatprep.subr.mxu0 0.0
    %955 = vmatpush2.msra.mxu0 0.0
    %956 = vmatprep.subr.mxu0 0.0
    %957 = vmatpush2.msra.mxu0 0.0
    %958 = vmatprep.subr.mxu0 0.0
    %959 = vmatpush2.msra.mxu0 0.0
    %960 = vmatprep.subr.mxu0 0.0
    %961 = vmatpush2.msra.mxu0 0.0
    %962 = vmatprep.subr.mxu0 0.0
    %963 = vmatpush2.msra.mxu0 0.0
    %964 = vmatprep.subr.mxu0 0.0
    %965 = vmatpush2.msra.mxu0 0.0
    %966 = vmatprep.subr.mxu0 0.0
    %967 = vmatpush2.msra.mxu0 0.0
    %968 = vmatprep.mubr.f32.mxu0 0.0
    %969 = vmatmul.mubr.f32.gmra.mxu0 %v882
    %v970 = vpop.f32.mrf.mxu0
    %v971 = vadd.f32 %v903, %v970
    %v972 = vpop.f32.mrf.mxu0
    %973 = vdwg.mxu0
    %974 = vst [vmem:[#allocation2] sm:$0x3] %v971
    // Predicated region
    $region22: #{model_1_2_forward.1} parent=1 // pred_check
      _
    $region23: #{model_1_2_forward.1} parent=1 // pred_check_branch
      %976 = sbr.rel (0) target = $region25
    $region24: #{model_1_2_forward.1} parent=1 // pred_region
      %s978 = ssub.s32 32, 32
      %979 = vsyncadd [#allocation3], %s978
      %s981 = sshll.u32 [#allocation2], 4
      %s982 = int_to_ptr.vmem [resolvable:$true] %s981
      %984 = dma.vmem_to_hbm [thread:$0]  %s982, 32, %s5, [#allocation3]
    $region25: #{model_1_2_forward.1} parent=1 // pred_fallthru
      _
    // Predicated region
    $region26: #{model_1_2_forward.1} parent=1 // pred_check
      _
    $region27: #{model_1_2_forward.1} parent=1 // pred_check_branch
      %986 = sbr.rel (0) target = $region29
    $region28: #{model_1_2_forward.1} parent=1 // pred_region
      %987 = dma.done [#allocation3], 32
    $region29: #{model_1_2_forward.1} parent=1 // pred_fallthru
      _
    %988 = vsyncpa [#allocation3], 1

</llo_original>
